<compile_context>
chip_gen: v6e
topology: v6e:2x2x1
jax: 0.10.0
libtpu: 0.0.40
codegen_flags: <defaults>
</compile_context>

<pallas_src>
import functools
import math

import jax
import jax.numpy as jnp
from jax.experimental import pallas as pl
from jax.experimental.pallas import tpu as pltpu


# ---------------------------------------------------------------------------
# Hardware-derived configuration
# ---------------------------------------------------------------------------

@functools.lru_cache(maxsize=1)
def _vmem_limit_bytes():
    """Scoped VMEM limit: physical VMEM minus headroom, capped at 100 MiB."""
    phys = 64 * 1024 * 1024
    try:
        info = pltpu.get_tpu_info()
        phys = int(getattr(info, "vmem_capacity_bytes", phys) or phys)
    except Exception:  # noqa: BLE001 - fall back to the conservative (v7x) size
        pass
    return int(min(phys - 16 * 1024 * 1024, 100 * 1024 * 1024))


@functools.lru_cache(maxsize=1)
def _single_buffer_supported():
    """One-time explicit feature probe for pl.Buffered(1) (single-buffered weights)."""
    def _k(x_ref, w_ref, o_ref):
        o_ref[...] = x_ref[...] + w_ref[...]

    x = jnp.zeros((8, 128), jnp.float32)
    try:
        fn = pl.pallas_call(
            _k,
            out_shape=jax.ShapeDtypeStruct((8, 128), jnp.float32),
            grid=(2,),
            in_specs=[
                pl.BlockSpec((8, 128), lambda i: (0, 0)),
                pl.BlockSpec((8, 128), lambda i: (0, 0), pipeline_mode=pl.Buffered(1)),
            ],
            out_specs=pl.BlockSpec((8, 128), lambda i: (0, 0)),
        )
        jax.jit(fn).lower(x, x).compile()
        return True
    except Exception:  # noqa: BLE001 - probe only; fallback is default double-buffering
        return False


def _weight_spec(p, grid_rank, single_buffer):
    """BlockSpec for a grid-invariant (weight / bias) operand, fully resident."""
    ndim = p.ndim
    if grid_rank == 1:
        index_map = lambda i, _n=ndim: (0,) * _n
    else:
        index_map = lambda b, q, _n=ndim: (0,) * _n
    if single_buffer:
        return pl.BlockSpec(p.shape, index_map, pipeline_mode=pl.Buffered(1))
    return pl.BlockSpec(p.shape, index_map)


def _row_blocking(n_rows, target=512):
    """Row tile (multiple of 8, <= target) and padded row count (multiple of tile)."""
    if n_rows <= target:
        block = ((n_rows + 7) // 8) * 8
    else:
        block = target
    n_pad = pl.cdiv(n_rows, block) * block
    return block, n_pad


# ---------------------------------------------------------------------------
# Pallas kernels
# ---------------------------------------------------------------------------

def _linear_kernel(x_ref, w_ref, b_ref, o_ref):
    """o = x @ w + b  (bf16 MXU inputs, f32 accumulation)."""
    o_ref[...] = (
        jnp.dot(x_ref[...].astype(jnp.bfloat16), w_ref[...],
                preferred_element_type=jnp.float32)
        + b_ref[...]
    ).astype(o_ref.dtype)


def pallas_linear(x2d, w, b):
    """x2d: (N, in) f32, w: (in, out) bf16, b: (1, out) f32 -> (N, out) f32, row-tiled."""
    n_rows, d_in = x2d.shape
    n_out = w.shape[1]
    block, n_pad = _row_blocking(n_rows)
    if n_pad != n_rows:
        x2d = jnp.pad(x2d, ((0, n_pad - n_rows), (0, 0)))
    single = _single_buffer_supported()

    out = pl.pallas_call(
        _linear_kernel,
        out_shape=jax.ShapeDtypeStruct((n_pad, n_out), jnp.float32),
        grid=(n_pad // block,),
        in_specs=[
            pl.BlockSpec((block, d_in), lambda i: (i, 0)),
            _weight_spec(w, 1, single),
            _weight_spec(b, 1, single),
        ],
        out_specs=pl.BlockSpec((block, n_out), lambda i: (i, 0)),
        compiler_params=pltpu.CompilerParams(
            dimension_semantics=("parallel",),
            vmem_limit_bytes=_vmem_limit_bytes()),
    )(x2d, w, b)
    if n_pad != n_rows:
        out = out[:n_rows]
    return out


def _qkv_proj_kernel(x_ref, w_ref, b_ref, q_ref, kv_ref):
    """Fused [Q|K|V] projection; writes Q and [K|V] as bf16 (MXU-ready, half HBM)."""
    d_model = q_ref.shape[-1]
    acc = (jnp.dot(x_ref[...].astype(jnp.bfloat16), w_ref[...],
                   preferred_element_type=jnp.float32)
           + b_ref[...])
    q_ref[...] = acc[:, :d_model].astype(q_ref.dtype)
    kv_ref[...] = acc[:, d_model:].astype(kv_ref.dtype)


def pallas_qkv_proj(x2d, wqkv, bqkv):
    """x2d: (N, D) f32 -> Q (N, D) bf16, KV (N, 2D) bf16; one matmul per layer (hoisted)."""
    n_rows, d_in = x2d.shape
    d_model = wqkv.shape[1] // 3
    block, n_pad = _row_blocking(n_rows)
    if n_pad != n_rows:
        x2d = jnp.pad(x2d, ((0, n_pad - n_rows), (0, 0)))
    single = _single_buffer_supported()

    q, kv = pl.pallas_call(
        _qkv_proj_kernel,
        out_shape=(jax.ShapeDtypeStruct((n_pad, d_model), jnp.bfloat16),
                   jax.ShapeDtypeStruct((n_pad, 2 * d_model), jnp.bfloat16)),
        grid=(n_pad // block,),
        in_specs=[
            pl.BlockSpec((block, d_in), lambda i: (i, 0)),
            _weight_spec(wqkv, 1, single),
            _weight_spec(bqkv, 1, single),
        ],
        out_specs=(pl.BlockSpec((block, d_model), lambda i: (i, 0)),
                   pl.BlockSpec((block, 2 * d_model), lambda i: (i, 0))),
        compiler_params=pltpu.CompilerParams(
            dimension_semantics=("parallel",),
            vmem_limit_bytes=_vmem_limit_bytes()),
    )(x2d, wqkv, bqkv)
    if n_pad != n_rows:
        q = q[:n_rows]
        kv = kv[:n_rows]
    return q, kv


def _layernorm(x, gamma, beta, eps=1e-5):
    mean = jnp.mean(x, axis=-1, keepdims=True)
    var = jnp.mean((x - mean) ** 2, axis=-1, keepdims=True)
    return (x - mean) * jax.lax.rsqrt(var + eps) * gamma + beta


def _encoder_layer_kernel(n_heads,
                          x_ref, q_ref, kv_ref,
                          wo_ref, bo_ref,
                          ln1_g_ref, ln1_b_ref,
                          w1_ref, b1_ref, w2_ref, b2_ref,
                          ln2_g_ref, ln2_b_ref,
                          o_ref):
    """Attention (pre-projected Q/KV) + residual/LN + FFN + residual/LN for one q tile."""
    q_tile, d_model = x_ref.shape
    dh = d_model // n_heads
    scale = 1.0 / math.sqrt(dh)

    q_bf = q_ref[...]            # (tq, D)  bf16
    kv_bf = kv_ref[...]          # (S, 2D)  bf16, [K | V], fetched once per batch element

    # Heads stay a static Python loop (lane-splitting reshapes (S, D)->(S, H, dh) are
    # not reliably lowered by Mosaic). Per-head contexts are concatenated once into a
    # lane-dense (tq, D) slab instead of dh-wide masked stores into a scratch.
    # TODO(synk): full head-batched dot_general via pltpu.einshape is the next step.
    ctx_parts = []
    for h in range(n_heads):
        qh = q_bf[:, h * dh:(h + 1) * dh]                            # (tq, dh)
        kh = kv_bf[:, h * dh:(h + 1) * dh]                           # (S, dh)
        vh = kv_bf[:, d_model + h * dh:d_model + (h + 1) * dh]       # (S, dh)
        s = jax.lax.dot_general(                                     # (tq, S), no k.T copy
            qh, kh, dimension_numbers=(((1,), (1,)), ((), ())),
            preferred_element_type=jnp.float32) * scale
        s = s - jnp.max(s, axis=-1, keepdims=True)
        p = jnp.exp(s)
        p = p * pl.reciprocal(jnp.sum(p, axis=-1, keepdims=True), approx=True)
        ctx_parts.append(jnp.dot(p.astype(jnp.bfloat16), vh,
                                 preferred_element_type=jnp.float32))
    ctx = jnp.concatenate(ctx_parts, axis=-1)                        # (tq, D) f32

    attn = (jnp.dot(ctx.astype(jnp.bfloat16), wo_ref[...],
                    preferred_element_type=jnp.float32) + bo_ref[...])
    h1 = _layernorm(x_ref[...] + attn, ln1_g_ref[...], ln1_b_ref[...])

    # Feed-forward (bf16 MXU inputs, f32 accumulation); tanh GELU runs on the EUP slot.
    # TODO(synk): tanh-GELU assumed; switch approximate=False if the reference uses erf.
    ff = (jnp.dot(h1.astype(jnp.bfloat16), w1_ref[...],
                  preferred_element_type=jnp.float32) + b1_ref[...])
    ff = jax.nn.gelu(ff, approximate=True)
    ff = (jnp.dot(ff.astype(jnp.bfloat16), w2_ref[...],
                  preferred_element_type=jnp.float32) + b2_ref[...])

    out = _layernorm(h1 + ff, ln2_g_ref[...], ln2_b_ref[...])
    o_ref[...] = out.astype(o_ref.dtype)


def _pick_q_tile(seq_len, batch):
    """Largest divisor tile (pref. mult. of 16, <=512); batch==1 keeps >=2 tiles (v7x)."""
    cap = 512
    if batch == 1 and seq_len >= 16:
        cap = min(cap, seq_len // 2)
    for step in (16, 8):
        cands = [t for t in range(step, min(seq_len, cap) + 1, step) if seq_len % t == 0]
        if cands:
            return max(cands)
    return seq_len


_LAYER_WEIGHT_ORDER = ("wo", "bo", "ln1_g", "ln1_b",
                       "w1", "b1", "w2", "b2", "ln2_g", "ln2_b")


def pallas_encoder_layer(x, blk, n_heads):
    """x: (B, S, D) f32 -> (B, S, D) f32. QKV projected once, then (batch, q-tile) grid."""
    batch, seq_len, d_model = x.shape

    # Hoisted QKV projection (one MXU pass over all tokens; K/V never recomputed).
    q, kv = pallas_qkv_proj(x.reshape(batch * seq_len, d_model),
                            blk["wqkv"], blk["bqkv"])
    q = q.reshape(batch, seq_len, d_model)
    kv = kv.reshape(batch, seq_len, 2 * d_model)

    q_tile = _pick_q_tile(seq_len, batch)
    n_q = seq_len // q_tile
    single = _single_buffer_supported()

    in_specs = [
        pl.BlockSpec((None, q_tile, d_model), lambda b, qi: (b, qi, 0)),      # x (residual)
        pl.BlockSpec((None, q_tile, d_model), lambda b, qi: (b, qi, 0)),      # Q tile
        pl.BlockSpec((None, seq_len, 2 * d_model), lambda b, qi: (b, 0, 0)),  # full-seq K|V
    ]
    args = [x, q, kv]
    for name in _LAYER_WEIGHT_ORDER:
        p = blk[name]
        in_specs.append(_weight_spec(p, 2, single))
        args.append(p)

    return pl.pallas_call(
        functools.partial(_encoder_layer_kernel, n_heads),
        out_shape=jax.ShapeDtypeStruct((batch, seq_len, d_model), x.dtype),
        grid=(batch, n_q),
        in_specs=in_specs,
        out_specs=pl.BlockSpec((None, q_tile, d_model), lambda b, qi: (b, qi, 0)),
        compiler_params=pltpu.CompilerParams(
            dimension_semantics=("parallel", "parallel"),
            vmem_limit_bytes=_vmem_limit_bytes()),
    )(*args)


# ---------------------------------------------------------------------------
# Parameter initialization (deterministic, synthetic)
# ---------------------------------------------------------------------------

def init_params(key, n_vocab, n_blocks, n_heads, emb_size, d_model, d_ff, max_seq_len):
    del n_heads
    std = 0.02
    keys = jax.random.split(key, 3 + n_blocks)
    params = {}
    params["tok_emb"] = (jax.random.normal(keys[0], (n_vocab, emb_size)) * std).astype(jnp.float32)
    params["seg_emb"] = (jax.random.normal(keys[1], (2, emb_size)) * std).astype(jnp.float32)

    # Sinusoidal positional encoding (max_seq_len, emb_size)
    pos = jnp.arange(max_seq_len, dtype=jnp.float32)[:, None]
    i = jnp.arange(emb_size, dtype=jnp.float32)[None, :]
    angle = pos / jnp.power(10000.0, (2.0 * jnp.floor(i / 2.0)) / emb_size)
    pe = jnp.where((jnp.arange(emb_size)[None, :] % 2) == 0, jnp.sin(angle), jnp.cos(angle))
    params["pos_emb"] = pe.astype(jnp.float32)

    # bf16 weights (halved DMA/VMEM, full bf16 MXU rate); biases / LN params stay f32.
    params["fc_w"] = (jax.random.normal(keys[2], (emb_size, d_model)) * std).astype(jnp.bfloat16)
    params["fc_b"] = jnp.zeros((1, d_model), jnp.float32)

    blocks = []
    for bi in range(n_blocks):
        bk = jax.random.split(keys[3 + bi], 6)
        wq = jax.random.normal(bk[0], (d_model, d_model)) * std
        wk = jax.random.normal(bk[1], (d_model, d_model)) * std
        wv = jax.random.normal(bk[2], (d_model, d_model)) * std
        blk = {
            # Fused [Q|K|V] projection: one (D, 3D) matmul instead of three (D, D).
            "wqkv": jnp.concatenate([wq, wk, wv], axis=1).astype(jnp.bfloat16),
            "bqkv": jnp.zeros((1, 3 * d_model), jnp.float32),
            "wo": (jax.random.normal(bk[3], (d_model, d_model)) * std).astype(jnp.bfloat16),
            "bo": jnp.zeros((1, d_model), jnp.float32),
            "ln1_g": jnp.ones((1, d_model), jnp.float32),
            "ln1_b": jnp.zeros((1, d_model), jnp.float32),
            "w1": (jax.random.normal(bk[4], (d_model, d_ff)) * std).astype(jnp.bfloat16),
            "b1": jnp.zeros((1, d_ff), jnp.float32),
            "w2": (jax.random.normal(bk[5], (d_ff, d_model)) * std).astype(jnp.bfloat16),
            "b2": jnp.zeros((1, d_model), jnp.float32),
            "ln2_g": jnp.ones((1, d_model), jnp.float32),
            "ln2_b": jnp.zeros((1, d_model), jnp.float32),
        }
        blocks.append(blk)
    params["blocks"] = blocks
    return params


# ---------------------------------------------------------------------------
# Forward pass (embedding gathers in JAX, all matmul/attention/LN/FFN in Pallas)
# ---------------------------------------------------------------------------

def bertrando_forward(params, inputs, segments, n_heads):
    batch, seq_len = inputs.shape
    # TransformerEmbedding: token + positional + segment (dropout = identity in eval).
    # TODO(synk): embedding gathers stay in plain JAX (data-dependent HBM gather).
    tok = params["tok_emb"][inputs]                    # (B, S, E)
    pos = params["pos_emb"][:seq_len][None, :, :]      # (1, S, E)
    seg = params["seg_emb"][segments]                  # (B, S, E)
    x = tok + pos + seg

    emb_size = x.shape[-1]
    d_model = params["fc_w"].shape[1]

    # embedding_hidden_fc (row-tiled Pallas matmul kernel)
    x = pallas_linear(x.reshape(batch * seq_len, emb_size), params["fc_w"], params["fc_b"])
    x = x.reshape(batch, seq_len, d_model)

    # Transformer encoder stack (QKV projection kernel + fused attn/FFN kernel per layer)
    # TODO(synk): no padding/attention mask — the reference forward takes none either.
    for blk in params["blocks"]:
        x = pallas_encoder_layer(x, blk, n_heads)
    return x


if __name__ == "__main__":
    # Small, lane-dense configuration consistent with the module (embedding_size=128 default).
    n_vocab = 100
    n_blocks = 2
    n_heads = 4
    emb_size = 128
    d_model = 128
    d_ff = 256
    max_seq_len = 16
    batch, seq_len = 2, 8

    key = jax.random.PRNGKey(0)
    pkey, ikey, skey = jax.random.split(key, 3)

    params = init_params(pkey, n_vocab, n_blocks, n_heads, emb_size, d_model, d_ff, max_seq_len)
    inputs = jax.random.randint(ikey, (batch, seq_len), 0, n_vocab, dtype=jnp.int32)
    segments = jax.random.randint(skey, (batch, seq_len), 0, 2, dtype=jnp.int32)

    out = bertrando_forward(params, inputs, segments, n_heads)
    out = jax.block_until_ready(out)
    assert out.shape == (batch, seq_len, d_model)
    assert bool(jnp.all(jnp.isfinite(out)))
    print("KERNEL_OK")
</pallas_src>

<mosaic_0001>
module attributes {stable_mosaic.version = 11 : i64} {
  func.func @_linear_kernel(%arg0: i32, %arg1: memref<16x128xf32, #tpu.memory_space<vmem>>, %arg2: memref<128x128xbf16, #tpu.memory_space<vmem>>, %arg3: memref<1x128xf32, #tpu.memory_space<vmem>>, %arg4: memref<16x128xf32, #tpu.memory_space<vmem>>) attributes {dimension_semantics = [#tpu.dimension_semantics<parallel>], iteration_bounds = array<i64: 1>, scalar_prefetch = 0 : i64, scratch_operands = 0 : i64, tpu.core_type = #tpu.core_type<tc>, window_params = [{transform_indices = @transform_0, window_bounds = array<i64: 16, 128>}, {pipeline_mode = #tpu.pipeline_mode<synchronous>, transform_indices = @transform_1, window_bounds = array<i64: 128, 128>}, {pipeline_mode = #tpu.pipeline_mode<synchronous>, transform_indices = @transform_2, window_bounds = array<i64: 1, 128>}, {transform_indices = @transform_3, window_bounds = array<i64: 16, 128>}]} {
    %c0 = arith.constant 0 : index
    %c0_0 = arith.constant 0 : index
    %0 = vector.load %arg1[%c0, %c0_0] : memref<16x128xf32, #tpu.memory_space<vmem>>, vector<16x128xf32>
    %1 = arith.truncf %0 : vector<16x128xf32> to vector<16x128xbf16>
    %c0_1 = arith.constant 0 : index
    %c0_2 = arith.constant 0 : index
    %2 = vector.load %arg2[%c0_1, %c0_2] : memref<128x128xbf16, #tpu.memory_space<vmem>>, vector<128x128xbf16>
    %cst = arith.constant dense<0.000000e+00> : vector<16x128xf32>
    %3 = tpu.matmul %1, %2, %cst {dimension_numbers = #tpu.dot_dimension_numbers<[1], [0], [0], [1], [0, 0, 1, 1], [], []>} : vector<16x128xbf16>, vector<128x128xbf16>, vector<16x128xf32> -> vector<16x128xf32>
    %c0_3 = arith.constant 0 : index
    %c0_4 = arith.constant 0 : index
    %4 = vector.load %arg3[%c0_3, %c0_4] : memref<1x128xf32, #tpu.memory_space<vmem>>, vector<1x128xf32>
    %5 = vector.broadcast %4 : vector<1x128xf32> to vector<16x128xf32>
    %6 = arith.addf %3, %5 : vector<16x128xf32>
    %c0_5 = arith.constant 0 : index
    %c0_6 = arith.constant 0 : index
    %7 = vector.load %arg4[%c0_5, %c0_6] : memref<16x128xf32, #tpu.memory_space<vmem>>, vector<16x128xf32>
    tpu.vector_store %arg4[%c0_5, %c0_6], %6 {strides = array<i32>} : memref<16x128xf32, #tpu.memory_space<vmem>>, vector<16x128xf32>,
    return
  }
  func.func @transform_0(%arg0: i32) -> (i32, i32) {
    %c0_i32 = arith.constant 0 : i32
    %c0_i32_0 = arith.constant 0 : i32
    return %arg0, %c0_i32 : i32, i32
  }
  func.func @transform_1(%arg0: i32) -> (i32, i32) {
    %c0_i32 = arith.constant 0 : i32
    %c0_i32_0 = arith.constant 0 : i32
    %c0_i32_1 = arith.constant 0 : i32
    return %c0_i32, %c0_i32_0 : i32, i32
  }
  func.func @transform_2(%arg0: i32) -> (i32, i32) {
    %c0_i32 = arith.constant 0 : i32
    %c0_i32_0 = arith.constant 0 : i32
    %c0_i32_1 = arith.constant 0 : i32
    return %c0_i32, %c0_i32_0 : i32, i32
  }
  func.func @transform_3(%arg0: i32) -> (i32, i32) {
    %c0_i32 = arith.constant 0 : i32
    %c0_i32_0 = arith.constant 0 : i32
    return %arg0, %c0_i32 : i32, i32
  }
}

</mosaic_0001>

<llo_original>
// kernel: tpu_custom_call.1
$region0: #{tpu_custom_call.1}
  #allocation0 [shape = 'u32[]', space=smem, size = 0x4, offset = 0x4, fixed_abs, tag = 'smem constant byte address 0x4 - core index']
  #allocation1 [shape = 'u32[144,128]{1,0:T(1,128)}', space=vmem, size = 0x12000, scoped, tag = 'internal scratch']
  %s0 = inlined_call_operand.hbm [shape: f32[16,128], index: 0, kind: input, shape index: {}]
  %s1 = inlined_call_operand.hbm [shape: bf16[128,128], index: 1, kind: input, shape index: {}]
  %s2 = inlined_call_operand.vmem [shape: f32[1,128], index: 2, kind: input, shape index: {}]
  %s3 = inlined_call_operand.hbm [shape: f32[16,128], index: 3, kind: output, shape index: {}]
  %s4 = sld [smem:[#allocation0]]
  $region30: #{tpu_custom_call.1} parent=0
    _
  %s6 = ssub.s32 1, %s4
  %s7 = scalar_select 0, %s6, %s4
  $region1: #{tpu_custom_call.1} parent=0
    #allocation2 [shape = 'u8[8192]{0}', space=vmem, size = 0x2000, scoped, tag = 'input window, operand 0, single buffered']
    #allocation3 [shape = 's32[1]{0}', space=sflag, size = 0x4, scoped, tag = 'scoped memory for tpu_custom_call.1']
    #allocation4 [shape = 's32[1]{0}', space=sflag, size = 0x4, scoped, tag = 'scoped memory for tpu_custom_call.1']
    #allocation5 [shape = 'u8[32768]{0}', space=vmem, size = 0x8000, scoped, tag = 'input window, operand 1, single buffered']
    #allocation6 [shape = 's32[1]{0}', space=sflag, size = 0x4, scoped, tag = 'scoped memory for tpu_custom_call.1']
    #allocation7 [shape = 'u8[8192]{0}', space=vmem, size = 0x2000, scoped, tag = 'output window, operand 0, single buffered']
    %8 = vsyncpa [#allocation3], 0
    %9 = vsyncpa [#allocation6], 0
    %10 = vsyncpa [#allocation4], 0
    // Predicated region
    $region2: #{tpu_custom_call.1} parent=1 // pred_check
      _
    $region3: #{tpu_custom_call.1} parent=1 // pred_check_branch
      %12 = sbr.rel (0) target = $region5
    $region4: #{tpu_custom_call.1} parent=1 // pred_region
      %s14 = ssub.s32 256, 256
      %15 = vsyncadd [#allocation3], %s14
      %s16 = sshll.u32 [#allocation2], 4
      %s17 = int_to_ptr.vmem [resolvable:$true] %s16
      %22 = dma.hbm_to_vmem [thread:$0]  %s0, 256, %s17, [#allocation3], 128, 128, 8
    $region5: #{tpu_custom_call.1} parent=1 // pred_fallthru
      _
    // Predicated region
    $region6: #{tpu_custom_call.1} parent=1 // pred_check
      _
    $region7: #{tpu_custom_call.1} parent=1 // pred_check_branch
      %24 = sbr.rel (0) target = $region9
    $region8: #{tpu_custom_call.1} parent=1 // pred_region
      %s26 = ssub.s32 1024, 1024
      %27 = vsyncadd [#allocation6], %s26
      %s28 = sshll.u32 [#allocation5], 4
      %s29 = int_to_ptr.vmem [resolvable:$true] %s28
      %34 = dma.hbm_to_vmem [thread:$0]  %s1, 1024, %s29, [#allocation6], 64, 64, 4
    $region9: #{tpu_custom_call.1} parent=1 // pred_fallthru
      _
    // Predicated region
    $region10: #{tpu_custom_call.1} parent=1 // pred_check
      _
    $region11: #{tpu_custom_call.1} parent=1 // pred_check_branch
      %36 = sbr.rel (0) target = $region13
    $region12: #{tpu_custom_call.1} parent=1 // pred_region
      _
    $region13: #{tpu_custom_call.1} parent=1 // pred_fallthru
      _
    // Predicated region
    $region14: #{tpu_custom_call.1} parent=1 // pred_check
      _
    $region15: #{tpu_custom_call.1} parent=1 // pred_check_branch
      %38 = sbr.rel (0) target = $region17
    $region16: #{tpu_custom_call.1} parent=1 // pred_region
      %39 = dma.done [#allocation3], 256
    $region17: #{tpu_custom_call.1} parent=1 // pred_fallthru
      _
    // Predicated region
    $region18: #{tpu_custom_call.1} parent=1 // pred_check
      _
    $region19: #{tpu_custom_call.1} parent=1 // pred_check_branch
      %41 = sbr.rel (0) target = $region21
    $region20: #{tpu_custom_call.1} parent=1 // pred_region
      %42 = dma.done [#allocation6], 1024
    $region21: #{tpu_custom_call.1} parent=1 // pred_fallthru
      _
    %v44 = vld [vmem:[#allocation2] sm:$0xff]
    %v45 = vld [vmem:[#allocation2 + $0x8] sm:$0xff]
    %v46 = vpack.c.bf16 %v45, %v44
    %v47 = vld [vmem:[#allocation5] sm:$0xf]
    %v48 = vld [vmem:[#allocation5 + $0x4] sm:$0xf]
    %v49 = vld [vmem:[#allocation5 + $0x8] sm:$0xf]
    %v50 = vld [vmem:[#allocation5 + $0xc] sm:$0xf]
    %v51 = vld [vmem:[#allocation5 + $0x10] sm:$0xf]
    %v52 = vld [vmem:[#allocation5 + $0x14] sm:$0xf]
    %v53 = vld [vmem:[#allocation5 + $0x18] sm:$0xf]
    %v54 = vld [vmem:[#allocation5 + $0x1c] sm:$0xf]
    %v55 = vld [vmem:[#allocation5 + $0x20] sm:$0xf]
    %v56 = vld [vmem:[#allocation5 + $0x24] sm:$0xf]
    %v57 = vld [vmem:[#allocation5 + $0x28] sm:$0xf]
    %v58 = vld [vmem:[#allocation5 + $0x2c] sm:$0xf]
    %v59 = vld [vmem:[#allocation5 + $0x30] sm:$0xf]
    %v60 = vld [vmem:[#allocation5 + $0x34] sm:$0xf]
    %v61 = vld [vmem:[#allocation5 + $0x38] sm:$0xf]
    %v62 = vld [vmem:[#allocation5 + $0x3c] sm:$0xf]
    %v63 = vld [vmem:[%s2] sm:$0x1]
    %v65 = vlaneseq
    %v66 = vshrl.u32 %v65, 7
    %v67 = vsub.s32 0, %v66
    %v68 = vrot.slane %v63, %v67
    %v86 = vunpack.c.l.b16 %v47
    %v87 = vunpack.c.l.b16 %v48
    %v88 = vunpack.c.l.b16 %v49
    %v89 = vunpack.c.l.b16 %v50
    %v90 = vunpack.c.l.b16 %v51
    %v91 = vunpack.c.l.b16 %v52
    %v92 = vunpack.c.l.b16 %v53
    %v93 = vunpack.c.l.b16 %v54
    %v94 = vunpack.c.l.b16 %v55
    %v95 = vunpack.c.l.b16 %v56
    %v96 = vunpack.c.l.b16 %v57
    %v97 = vunpack.c.l.b16 %v58
    %v98 = vunpack.c.l.b16 %v59
    %v99 = vunpack.c.l.b16 %v60
    %v100 = vunpack.c.l.b16 %v61
    %v101 = vunpack.c.l.b16 %v62
    %v102 = vpack.c.b16 %v87, %v86
    %v103 = vpack.c.b16 %v89, %v88
    %v104 = vpack.c.b16 %v91, %v90
    %v105 = vpack.c.b16 %v93, %v92
    %v106 = vpack.c.b16 %v95, %v94
    %v107 = vpack.c.b16 %v97, %v96
    %v108 = vpack.c.b16 %v99, %v98
    %v109 = vpack.c.b16 %v101, %v100
    %118 = vmatprep.subr.bf16.mxu0 0
    %119 = vmatpush1.bf16.msra.mxu0 %v109
    %120 = vmatprep.subr.bf16.mxu0 0
    %121 = vmatpush1.bf16.msra.mxu0 %v108
    %122 = vmatprep.subr.bf16.mxu0 0
    %123 = vmatpush1.bf16.msra.mxu0 %v107
    %124 = vmatprep.subr.bf16.mxu0 0
    %125 = vmatpush1.bf16.msra.mxu0 %v106
    %126 = vmatprep.subr.bf16.mxu0 0
    %127 = vmatpush1.bf16.msra.mxu0 %v105
    %128 = vmatprep.subr.bf16.mxu0 0
    %129 = vmatpush1.bf16.msra.mxu0 %v104
    %130 = vmatprep.subr.bf16.mxu0 0
    %131 = vmatpush1.bf16.msra.mxu0 %v103
    %132 = vmatprep.subr.bf16.mxu0 0
    %133 = vmatpush1.bf16.msra.mxu0 %v102
    %134 = vmatprep.subr.bf16.mxu0 0
    %135 = vmatpush2.bf16.msra.mxu0 0
    %136 = vmatprep.subr.bf16.mxu0 0
    %137 = vmatpush2.bf16.msra.mxu0 0
    %138 = vmatprep.subr.bf16.mxu0 0
    %139 = vmatpush2.bf16.msra.mxu0 0
    %140 = vmatprep.subr.bf16.mxu0 0
    %141 = vmatpush2.bf16.msra.mxu0 0
    %142 = vmatprep.subr.bf16.mxu0 0
    %143 = vmatpush2.bf16.msra.mxu0 0
    %144 = vmatprep.subr.bf16.mxu0 0
    %145 = vmatpush2.bf16.msra.mxu0 0
    %146 = vmatprep.subr.bf16.mxu0 0
    %147 = vmatpush2.bf16.msra.mxu0 0
    %148 = vmatprep.subr.bf16.mxu0 0
    %149 = vmatpush2.bf16.msra.mxu0 0
    %150 = vmatprep.mubr.bf16.mxu0 0
    %151 = vmatmul.mubr.bf16.gmra.mxu0 %v46
    %v152 = vpop.f32.mrf.mxu0
    %v153 = vadd.f32 %v68, %v152
    %v154 = vpop.f32.mrf.mxu0
    %v155 = vpop.f32.mrf.mxu0
    %v156 = vadd.f32 %v68, %v155
    %v157 = vpop.f32.mrf.mxu0
    %158 = vdwg.mxu0
    %159 = vst [vmem:[#allocation7] sm:$0xff] %v153
    %160 = vst [vmem:[#allocation7 + $0x8] sm:$0xff] %v156
    // Predicated region
    $region22: #{tpu_custom_call.1} parent=1 // pred_check
      _
    $region23: #{tpu_custom_call.1} parent=1 // pred_check_branch
      %162 = sbr.rel (0) target = $region25
    $region24: #{tpu_custom_call.1} parent=1 // pred_region
      %s164 = ssub.s32 256, 256
      %165 = vsyncadd [#allocation4], %s164
      %s166 = sshll.u32 [#allocation7], 4
      %s167 = int_to_ptr.vmem [resolvable:$true] %s166
      %172 = dma.vmem_to_hbm [thread:$0]  %s167, 256, %s3, [#allocation4], 128, 128, 8
    $region25: #{tpu_custom_call.1} parent=1 // pred_fallthru
      _
    // Predicated region
    $region26: #{tpu_custom_call.1} parent=1 // pred_check
      _
    $region27: #{tpu_custom_call.1} parent=1 // pred_check_branch
      %174 = sbr.rel (0) target = $region29
    $region28: #{tpu_custom_call.1} parent=1 // pred_region
      %175 = dma.done [#allocation4], 256
    $region29: #{tpu_custom_call.1} parent=1 // pred_fallthru
      _
    %176 = vsyncpa [#allocation3], 1
    %177 = vsyncpa [#allocation6], 1
    %178 = vsyncpa [#allocation4], 1

</llo_original>
